<compile_context>
chip_gen: v6e
topology: v6e:2x2x1
jax: 0.10.0
libtpu: 0.0.40
codegen_flags: <defaults>
</compile_context>

<pallas_src>
import functools
import math

import jax
import jax.numpy as jnp
from jax.experimental import pallas as pl
from jax.experimental.pallas import tpu as pltpu


@functools.lru_cache(maxsize=None)
def _vmem_limit_bytes():
    """Generation-aware VMEM limit: ~75% of physical per-core VMEM."""
    cap = 64 * 1024 * 1024
    try:
        info_cap = pltpu.get_tpu_info().vmem_capacity_bytes
        if info_cap:
            cap = int(info_cap)
    except Exception:
        pass
    return min(int(cap * 3 // 4), 112 * 1024 * 1024)


def _fit_tile(dim, target, align):
    """Largest tile <= target that divides `dim` and is a multiple of `align`.

    Falls back to the full dimension (always a legal block) if no aligned
    divisor exists.
    """
    if dim <= target:
        return dim
    t = (target // align) * align
    while t >= align:
        if dim % t == 0:
            return t
        t -= align
    return dim


# ---------------------------------------------------------------------------
# Tiled matmul + bias kernel (fused QKV / fused KV / single projections)
# ---------------------------------------------------------------------------
def _matmul_bias_kernel(x_ref, w_ref, b_ref, o_ref, acc_ref):
    k_idx = pl.program_id(2)

    @pl.when(k_idx == 0)
    def _init():
        acc_ref[...] = jnp.zeros_like(acc_ref)

    x = x_ref[...]
    if x.dtype != w_ref.dtype:
        # In-kernel cast (VPU op hidden under the MXU); avoids a wrapper-side
        # astype pass over the activations in HBM.
        x = x.astype(w_ref.dtype)
    acc_ref[...] += jnp.dot(x, w_ref[...], preferred_element_type=jnp.float32)

    @pl.when(k_idx == pl.num_programs(2) - 1)
    def _finalize():
        o_ref[...] = (acc_ref[...] + b_ref[...]).astype(o_ref.dtype)


def pallas_matmul_bias(x, w_t, b, *, out_dtype=None, tm=512, tn=512, tk=512):
    """x: (M, K) @ w_t: (K, N) + b: (N,) -> (M, N), tiled, f32 accumulation."""
    m, kd = x.shape
    n = w_t.shape[1]
    out_dtype = out_dtype or x.dtype
    tm = _fit_tile(m, tm, 8)
    tn = _fit_tile(n, tn, 128)
    tk = _fit_tile(kd, tk, 128)
    grid = (m // tm, n // tn, kd // tk)

    bytes_accessed = (x.size * x.dtype.itemsize
                      + w_t.size * w_t.dtype.itemsize
                      + b.size * 4
                      + m * n * jnp.dtype(out_dtype).itemsize)
    cost = pl.CostEstimate(flops=2 * m * n * kd, transcendentals=0,
                           bytes_accessed=int(bytes_accessed))

    return pl.pallas_call(
        _matmul_bias_kernel,
        out_shape=jax.ShapeDtypeStruct((m, n), out_dtype),
        grid=grid,
        in_specs=[
            pl.BlockSpec((tm, tk), lambda i, j, kk: (i, kk)),
            pl.BlockSpec((tk, tn), lambda i, j, kk: (kk, j)),
            pl.BlockSpec((1, tn), lambda i, j, kk: (0, j)),
        ],
        out_specs=pl.BlockSpec((tm, tn), lambda i, j, kk: (i, j)),
        scratch_shapes=[pltpu.VMEM((tm, tn), jnp.float32)],
        compiler_params=pltpu.CompilerParams(
            dimension_semantics=("parallel", "parallel", "arbitrary"),
            vmem_limit_bytes=_vmem_limit_bytes()),
        cost_estimate=cost,
    )(x, w_t, b.reshape(1, n))


# ---------------------------------------------------------------------------
# Attention kernel: grid = (batch, q_tiles); all heads per step; fused out-proj
# ---------------------------------------------------------------------------
def _attention_kernel(*refs, mode, num_heads, head_dim, e_out, need_weights):
    if mode == "self":
        x_ref, wo_ref, bo_ref = refs[:3]
        rest = refs[3:]
        q_ref = k_ref = v_ref = x_ref
        q_off, k_off, v_off = 0, e_out, 2 * e_out
    elif mode == "kv":
        q_ref, kv_ref, wo_ref, bo_ref = refs[:4]
        rest = refs[4:]
        k_ref = v_ref = kv_ref
        q_off, k_off, v_off = 0, 0, e_out
    else:  # "sep"
        q_ref, k_ref, v_ref, wo_ref, bo_ref = refs[:5]
        rest = refs[5:]
        q_off = k_off = v_off = 0

    if need_weights:
        o_ref, w_ref, o_acc = rest
    else:
        o_ref, o_acc = rest
        w_ref = None

    w_sum = None
    for h in range(num_heads):
        lo = h * head_dim
        hi = lo + head_dim
        q_h = q_ref[:, q_off + lo:q_off + hi]          # (tq, hd)
        k_h = k_ref[:, k_off + lo:k_off + hi]          # (S, hd)
        v_h = v_ref[:, v_off + lo:v_off + hi]          # (S, hd)

        # scores = q @ k^T  (hd**-0.5 already folded into Wq / bq)
        scores = jax.lax.dot_general(
            q_h, k_h, (((1,), (1,)), ((), ())),
            preferred_element_type=jnp.float32)        # (tq, S) f32

        m = jnp.max(scores, axis=-1, keepdims=True)
        p = jnp.exp(scores - m)
        inv = 1.0 / jnp.sum(p, axis=-1, keepdims=True)

        # Per-head output; normalize the small (tq, hd) result, not the probs.
        o_h = jnp.dot(p.astype(v_h.dtype), v_h,
                      preferred_element_type=jnp.float32) * inv
        o_acc[:, lo:hi] = o_h

        if need_weights:
            pw = p * inv
            w_sum = pw if w_sum is None else w_sum + pw

    # Deferred output projection: ONE full-depth (tq, E) @ (E, E) matmul.
    out = jnp.dot(o_acc[...].astype(wo_ref.dtype), wo_ref[...],
                  preferred_element_type=jnp.float32) + bo_ref[...]
    o_ref[...] = out.astype(o_ref.dtype)

    if need_weights:
        # average_attn_weights=True: 1/num_heads applied once at the end,
        # accumulation done in f32 regardless of the output dtype.
        w_ref[...] = (w_sum * (1.0 / num_heads)).astype(w_ref.dtype)


def pallas_attention(mode, tensors, wo_t, bo, *, num_heads, need_weights,
                     out_dtype, weights_dtype=jnp.float32, tq_target=256):
    """Attention + fused output projection.

    mode == "self": tensors = (qkv,)  with qkv: (T, B, 3E)   (q|k|v columns)
    mode == "kv":   tensors = (q, kv) with q: (T, B, E), kv: (S, B, 2E)
    mode == "sep":  tensors = (q, k, v), each (L, B, E)
    wo_t: (E, E) = Wo^T, bo: (1, E).
    Returns (out (T, B, E), attn_weights (B, T, S) or None).
    """
    e = wo_t.shape[0]
    hd = e // num_heads

    if mode == "self":
        (qkv,) = tensors
        t, bsz, _ = qkv.shape
        s = t
        tq = t  # TODO(synk): q-tiling for the fused self path (shared block).
        in_specs = [pl.BlockSpec((t, None, 3 * e), lambda bi, qi: (0, bi, 0))]
    elif mode == "kv":
        q, kv = tensors
        t, bsz, _ = q.shape
        s = kv.shape[0]
        tq = _fit_tile(t, tq_target, 8)
        in_specs = [
            pl.BlockSpec((tq, None, e), lambda bi, qi: (qi, bi, 0)),
            pl.BlockSpec((s, None, 2 * e), lambda bi, qi: (0, bi, 0)),
        ]
    else:  # "sep"
        q, k, v = tensors
        t, bsz, _ = q.shape
        s = k.shape[0]
        tq = _fit_tile(t, tq_target, 8)
        in_specs = [
            pl.BlockSpec((tq, None, e), lambda bi, qi: (qi, bi, 0)),
            pl.BlockSpec((s, None, e), lambda bi, qi: (0, bi, 0)),
            pl.BlockSpec((s, None, e), lambda bi, qi: (0, bi, 0)),
        ]

    # Wo / bo resident across the whole grid (fetched once).
    in_specs += [
        pl.BlockSpec((e, e), lambda bi, qi: (0, 0)),
        pl.BlockSpec((1, e), lambda bi, qi: (0, 0)),
    ]

    out_shape = [jax.ShapeDtypeStruct((t, bsz, e), out_dtype)]
    out_specs = [pl.BlockSpec((tq, None, e), lambda bi, qi: (qi, bi, 0))]
    if need_weights:
        out_shape.append(jax.ShapeDtypeStruct((bsz, t, s), weights_dtype))
        out_specs.append(pl.BlockSpec((None, tq, s), lambda bi, qi: (bi, qi, 0)))

    kernel = functools.partial(
        _attention_kernel, mode=mode, num_heads=num_heads, head_dim=hd,
        e_out=e, need_weights=need_weights)

    act_bytes = sum(int(a.size) * a.dtype.itemsize for a in tensors)
    bytes_accessed = (act_bytes
                      + int(wo_t.size) * wo_t.dtype.itemsize
                      + t * bsz * e * jnp.dtype(out_dtype).itemsize
                      + (bsz * t * s * jnp.dtype(weights_dtype).itemsize
                         if need_weights else 0))
    cost = pl.CostEstimate(
        flops=4 * bsz * num_heads * t * s * hd + 2 * bsz * t * e * e,
        transcendentals=bsz * num_heads * t * s,
        bytes_accessed=int(bytes_accessed))

    outs = pl.pallas_call(
        kernel,
        out_shape=tuple(out_shape),
        grid=(bsz, t // tq),
        in_specs=in_specs,
        out_specs=tuple(out_specs),
        scratch_shapes=[pltpu.VMEM((tq, e), jnp.float32)],
        compiler_params=pltpu.CompilerParams(
            dimension_semantics=("parallel", "parallel"),
            vmem_limit_bytes=_vmem_limit_bytes()),
        cost_estimate=cost,
    )(*tensors, wo_t, bo)

    if need_weights:
        return outs[0], outs[1]
    return outs[0], None


# ---------------------------------------------------------------------------
# One-time parameter preparation (outside the hot path)
# ---------------------------------------------------------------------------
def prepare_params(params, num_heads, *, compute_dtype=jnp.float32,
                   out_dtype=jnp.float32):
    """Fold hd**-0.5 into Wq/bq, pre-transpose weights, build fused QKV / KV
    weights.  Done once, outside the forward hot path."""
    e = params["wq"].shape[0]
    hd = e // num_heads
    scale = float(hd) ** -0.5
    cd = compute_dtype

    wq_t = (params["wq"] * scale).T.astype(cd)
    wk_t = params["wk"].T.astype(cd)
    wv_t = params["wv"].T.astype(cd)
    bq = (params["bq"] * scale).astype(jnp.float32)
    bk = params["bk"].astype(jnp.float32)
    bv = params["bv"].astype(jnp.float32)

    prepared = {
        "compute_dtype": cd,
        "out_dtype": out_dtype,
        "wq_t": wq_t, "bq": bq,
        "wk_t": wk_t, "bk": bk,
        "wv_t": wv_t, "bv": bv,
        "wo_t": params["wo"].T.astype(cd),
        "bo": params["bo"].reshape(1, e).astype(jnp.float32),
    }
    kdim = params["wk"].shape[1]
    vdim = params["wv"].shape[1]
    if kdim == vdim:
        prepared["w_kv"] = jnp.concatenate([wk_t, wv_t], axis=1)
        prepared["b_kv"] = jnp.concatenate([bk, bv])
    if kdim == vdim == e:
        prepared["w_qkv"] = jnp.concatenate([wq_t, wk_t, wv_t], axis=1)
        prepared["b_qkv"] = jnp.concatenate([bq, bk, bv])
    return prepared


# ---------------------------------------------------------------------------
# Forward wrapper (only free reshapes; no XLA transposes / slices / casts)
# ---------------------------------------------------------------------------
def mha_forward(query, key, value, prepared, num_heads, *, need_weights=True):
    t, b, e = query.shape
    s = key.shape[0]
    cd = prepared["compute_dtype"]

    if (query is key) and (key is value) and "w_qkv" in prepared:
        # Self-attention: single fused QKV matmul, x read from HBM once.
        qkv = pallas_matmul_bias(query.reshape(t * b, e), prepared["w_qkv"],
                                 prepared["b_qkv"], out_dtype=cd)
        tensors = (qkv.reshape(t, b, 3 * e),)           # free reshape
        mode = "self"
    elif (key is value) and "w_kv" in prepared:
        q = pallas_matmul_bias(query.reshape(t * b, e), prepared["wq_t"],
                               prepared["bq"], out_dtype=cd)
        kv = pallas_matmul_bias(key.reshape(s * b, -1), prepared["w_kv"],
                                prepared["b_kv"], out_dtype=cd)
        tensors = (q.reshape(t, b, e), kv.reshape(s, b, 2 * e))
        mode = "kv"
    else:
        q = pallas_matmul_bias(query.reshape(t * b, e), prepared["wq_t"],
                               prepared["bq"], out_dtype=cd)
        k = pallas_matmul_bias(key.reshape(s * b, -1), prepared["wk_t"],
                               prepared["bk"], out_dtype=cd)
        v = pallas_matmul_bias(value.reshape(s * b, -1), prepared["wv_t"],
                               prepared["bv"], out_dtype=cd)
        tensors = (q.reshape(t, b, e), k.reshape(s, b, e), v.reshape(s, b, e))
        mode = "sep"

    # Output comes back directly in (T, B, E) (batch_first=False layout).
    return pallas_attention(mode, tensors, prepared["wo_t"], prepared["bo"],
                            num_heads=num_heads, need_weights=need_weights,
                            out_dtype=prepared["out_dtype"])


# Pure-JAX f32 reference for verification.
def mha_reference(query, key, value, params, num_heads):
    t, b, e = query.shape
    s = key.shape[0]
    hd = e // num_heads
    q = query.reshape(t * b, e) @ params["wq"].T + params["bq"]
    k = key.reshape(s * b, e) @ params["wk"].T + params["bk"]
    v = value.reshape(s * b, e) @ params["wv"].T + params["bv"]
    q = q.reshape(t, b * num_heads, hd).transpose(1, 0, 2) * hd ** -0.5
    k = k.reshape(s, b * num_heads, hd).transpose(1, 0, 2)
    v = v.reshape(s, b * num_heads, hd).transpose(1, 0, 2)
    scores = jnp.einsum("btd,bsd->bts", q, k)
    w = jax.nn.softmax(scores, axis=-1)
    o = jnp.einsum("bts,bsd->btd", w, v)
    o = o.transpose(1, 0, 2).reshape(t, b, e)
    o = o.reshape(t * b, e) @ params["wo"].T + params["bo"]
    o = o.reshape(t, b, e)
    w = jnp.mean(w.reshape(b, num_heads, t, s), axis=1)
    return o, w


# ---------------------------------------------------------------------------
# Main
# ---------------------------------------------------------------------------
if __name__ == "__main__":
    embed_dim, num_heads = 128, 4
    tgt_len, src_len, bsz = 8, 16, 2

    root = jax.random.PRNGKey(0)
    rngs = jax.random.split(root, 12)

    def xavier_uniform(rng, shape):
        fan_out, fan_in = shape
        bound = math.sqrt(6.0 / (fan_in + fan_out))
        return jax.random.uniform(rng, shape, jnp.float32, -bound, bound)

    params = {
        "wq": xavier_uniform(rngs[0], (embed_dim, embed_dim)),
        "wk": xavier_uniform(rngs[1], (embed_dim, embed_dim)),
        "wv": xavier_uniform(rngs[2], (embed_dim, embed_dim)),
        "wo": xavier_uniform(rngs[3], (embed_dim, embed_dim)),
        "bq": 0.1 * jax.random.normal(rngs[4], (embed_dim,), jnp.float32),
        "bk": 0.1 * jax.random.normal(rngs[5], (embed_dim,), jnp.float32),
        "bv": 0.1 * jax.random.normal(rngs[6], (embed_dim,), jnp.float32),
        "bo": 0.1 * jax.random.normal(rngs[7], (embed_dim,), jnp.float32),
    }

    prepared_f32 = prepare_params(params, num_heads)

    # --- self-attention (query is key is value): fused QKV path -------------
    x_self = jax.random.normal(rngs[8], (tgt_len, bsz, embed_dim), jnp.float32)
    out_sa, w_sa = mha_forward(x_self, x_self, x_self, prepared_f32, num_heads)
    out_sa = jax.block_until_ready(out_sa)
    w_sa = jax.block_until_ready(w_sa)
    ref_out_sa, ref_w_sa = mha_reference(x_self, x_self, x_self, params,
                                         num_heads)
    assert out_sa.shape == (tgt_len, bsz, embed_dim)
    assert w_sa.shape == (bsz, tgt_len, tgt_len)
    assert jnp.allclose(out_sa, ref_out_sa, atol=2e-2, rtol=2e-2), \
        float(jnp.max(jnp.abs(out_sa - ref_out_sa)))
    assert jnp.allclose(w_sa, ref_w_sa, atol=1e-2, rtol=1e-2), \
        float(jnp.max(jnp.abs(w_sa - ref_w_sa)))

    # --- cross-attention (distinct q/k/v): separate projection path ---------
    query = jax.random.normal(rngs[9], (tgt_len, bsz, embed_dim), jnp.float32)
    key = jax.random.normal(rngs[10], (src_len, bsz, embed_dim), jnp.float32)
    value = jax.random.normal(rngs[11], (src_len, bsz, embed_dim), jnp.float32)
    out_ca, w_ca = mha_forward(query, key, value, prepared_f32, num_heads)
    out_ca = jax.block_until_ready(out_ca)
    w_ca = jax.block_until_ready(w_ca)
    ref_out_ca, ref_w_ca = mha_reference(query, key, value, params, num_heads)
    assert out_ca.shape == (tgt_len, bsz, embed_dim)
    assert w_ca.shape == (bsz, tgt_len, src_len)
    assert jnp.allclose(out_ca, ref_out_ca, atol=2e-2, rtol=2e-2), \
        float(jnp.max(jnp.abs(out_ca - ref_out_ca)))
    assert jnp.allclose(w_ca, ref_w_ca, atol=1e-2, rtol=1e-2), \
        float(jnp.max(jnp.abs(w_ca - ref_w_ca)))

    # --- key is value (shared K/V input): fused KV path ---------------------
    out_kv, w_kv = mha_forward(query, key, key, prepared_f32, num_heads)
    out_kv = jax.block_until_ready(out_kv)
    ref_out_kv, ref_w_kv = mha_reference(query, key, key, params, num_heads)
    assert jnp.allclose(out_kv, ref_out_kv, atol=2e-2, rtol=2e-2), \
        float(jnp.max(jnp.abs(out_kv - ref_out_kv)))
    assert jnp.allclose(w_kv, ref_w_kv, atol=1e-2, rtol=1e-2), \
        float(jnp.max(jnp.abs(w_kv - ref_w_kv)))

    # --- need_weights=False: skip the (B, T, S) weights writeback -----------
    out_nw, w_nw = mha_forward(query, key, value, prepared_f32, num_heads,
                               need_weights=False)
    out_nw = jax.block_until_ready(out_nw)
    assert w_nw is None
    assert jnp.allclose(out_nw, ref_out_ca, atol=2e-2, rtol=2e-2), \
        float(jnp.max(jnp.abs(out_nw - ref_out_ca)))

    # --- bf16 matmul operands (v6e/v7x MXU fast path), f32 accumulation -----
    prepared_bf16 = prepare_params(params, num_heads,
                                   compute_dtype=jnp.bfloat16,
                                   out_dtype=jnp.float32)
    out_bf16, w_bf16 = mha_forward(query, key, value, prepared_bf16, num_heads)
    out_bf16 = jax.block_until_ready(out_bf16)
    assert jnp.allclose(out_bf16, ref_out_ca, atol=1e-1, rtol=1e-1), \
        float(jnp.max(jnp.abs(out_bf16 - ref_out_ca)))
    assert jnp.allclose(w_bf16, ref_w_ca, atol=5e-2, rtol=5e-2), \
        float(jnp.max(jnp.abs(w_bf16 - ref_w_ca)))

    print("KERNEL_OK")
</pallas_src>

<mosaic_0001>
module attributes {stable_mosaic.version = 11 : i64} {
  func.func @_matmul_bias_kernel(%arg0: i32, %arg1: i32, %arg2: i32, %arg3: memref<16x128xf32, #tpu.memory_space<vmem>>, %arg4: memref<128x384xf32, #tpu.memory_space<vmem>>, %arg5: memref<1x384xf32, #tpu.memory_space<vmem>>, %arg6: memref<16x384xf32, #tpu.memory_space<vmem>>, %arg7: memref<16x384xf32, #tpu.memory_space<vmem>>) attributes {dimension_semantics = [#tpu.dimension_semantics<parallel>, #tpu.dimension_semantics<parallel>, #tpu.dimension_semantics<arbitrary>], iteration_bounds = array<i64: 1, 1, 1>, scalar_prefetch = 0 : i64, scratch_operands = 1 : i64, tpu.core_type = #tpu.core_type<tc>, window_params = [{transform_indices = @transform_0, window_bounds = array<i64: 16, 128>}, {transform_indices = @transform_1, window_bounds = array<i64: 128, 384>}, {transform_indices = @transform_2, window_bounds = array<i64: 1, 384>}, {transform_indices = @transform_3, window_bounds = array<i64: 16, 384>}]} {
    %c0_i32 = arith.constant 0 : i32
    %0 = arith.cmpi eq, %arg2, %c0_i32 : i32
    %1 = arith.extui %0 : i1 to i32
    %c0_i32_0 = arith.constant 0 : i32
    %2 = arith.cmpi ne, %1, %c0_i32_0 : i32
    scf.if %2 {
      %cst_10 = arith.constant 0.000000e+00 : f32
      %12 = vector.broadcast %cst_10 : f32 to vector<16x384xf32>
      %c0_11 = arith.constant 0 : index
      %c0_12 = arith.constant 0 : index
      %13 = vector.load %arg7[%c0_11, %c0_12] : memref<16x384xf32, #tpu.memory_space<vmem>>, vector<16x384xf32>
      tpu.vector_store %arg7[%c0_11, %c0_12], %12 {strides = array<i32>} : memref<16x384xf32, #tpu.memory_space<vmem>>, vector<16x384xf32>,
    } else {
    }
    %c0 = arith.constant 0 : index
    %c0_1 = arith.constant 0 : index
    %3 = vector.load %arg3[%c0, %c0_1] : memref<16x128xf32, #tpu.memory_space<vmem>>, vector<16x128xf32>
    %c0_2 = arith.constant 0 : index
    %c0_3 = arith.constant 0 : index
    %4 = vector.load %arg7[%c0_2, %c0_3] : memref<16x384xf32, #tpu.memory_space<vmem>>, vector<16x384xf32>
    %c0_4 = arith.constant 0 : index
    %c0_5 = arith.constant 0 : index
    %5 = vector.load %arg4[%c0_4, %c0_5] : memref<128x384xf32, #tpu.memory_space<vmem>>, vector<128x384xf32>
    %cst = arith.constant dense<0.000000e+00> : vector<16x384xf32>
    %6 = tpu.matmul %3, %5, %cst {dimension_numbers = #tpu.dot_dimension_numbers<[1], [0], [0], [1], [0, 0, 1, 1], [], []>} : vector<16x128xf32>, vector<128x384xf32>, vector<16x384xf32> -> vector<16x384xf32>
    %7 = arith.addf %4, %6 : vector<16x384xf32>
    %c0_6 = arith.constant 0 : index
    %c0_7 = arith.constant 0 : index
    %8 = vector.load %arg7[%c0_6, %c0_7] : memref<16x384xf32, #tpu.memory_space<vmem>>, vector<16x384xf32>
    tpu.vector_store %arg7[%c0_6, %c0_7], %7 {strides = array<i32>} : memref<16x384xf32, #tpu.memory_space<vmem>>, vector<16x384xf32>,
    %c0_i32_8 = arith.constant 0 : i32
    %9 = arith.cmpi eq, %arg2, %c0_i32_8 : i32
    %10 = arith.extui %9 : i1 to i32
    %c0_i32_9 = arith.constant 0 : i32
    %11 = arith.cmpi ne, %10, %c0_i32_9 : i32
    scf.if %11 {
      %c0_10 = arith.constant 0 : index
      %c0_11 = arith.constant 0 : index
      %12 = vector.load %arg7[%c0_10, %c0_11] : memref<16x384xf32, #tpu.memory_space<vmem>>, vector<16x384xf32>
      %c0_12 = arith.constant 0 : index
      %c0_13 = arith.constant 0 : index
      %13 = vector.load %arg5[%c0_12, %c0_13] : memref<1x384xf32, #tpu.memory_space<vmem>>, vector<1x384xf32>
      %14 = vector.broadcast %13 : vector<1x384xf32> to vector<16x384xf32>
      %15 = arith.addf %12, %14 : vector<16x384xf32>
      %c0_14 = arith.constant 0 : index
      %c0_15 = arith.constant 0 : index
      %16 = vector.load %arg6[%c0_14, %c0_15] : memref<16x384xf32, #tpu.memory_space<vmem>>, vector<16x384xf32>
      tpu.vector_store %arg6[%c0_14, %c0_15], %15 {strides = array<i32>} : memref<16x384xf32, #tpu.memory_space<vmem>>, vector<16x384xf32>,
    } else {
    }
    return
  }
  func.func @transform_0(%arg0: i32, %arg1: i32, %arg2: i32) -> (i32, i32) {
    %c0_i32 = arith.constant 0 : i32
    return %arg0, %arg2 : i32, i32
  }
  func.func @transform_1(%arg0: i32, %arg1: i32, %arg2: i32) -> (i32, i32) {
    %c0_i32 = arith.constant 0 : i32
    return %arg2, %arg1 : i32, i32
  }
  func.func @transform_2(%arg0: i32, %arg1: i32, %arg2: i32) -> (i32, i32) {
    %c0_i32 = arith.constant 0 : i32
    %c0_i32_0 = arith.constant 0 : i32
    return %c0_i32, %arg1 : i32, i32
  }
  func.func @transform_3(%arg0: i32, %arg1: i32, %arg2: i32) -> (i32, i32) {
    %c0_i32 = arith.constant 0 : i32
    return %arg0, %arg1 : i32, i32
  }
}

</mosaic_0001>

<llo_original>
// kernel: tpu_custom_call.1
$region0: #{tpu_custom_call.1}
  #allocation0 [shape = 'u32[]', space=smem, size = 0x4, offset = 0x4, fixed_abs, tag = 'smem constant byte address 0x4 - core index']
  #allocation1 [shape = 'u32[144,128]{1,0:T(1,128)}', space=vmem, size = 0x12000, scoped, tag = 'internal scratch']
  #allocation2 [shape = 'f32[16,384]{1,0:T(8,128)}', space=vmem, size = 0x6000, scoped, tag = 'scratch operand']
  %s0 = inlined_call_operand.hbm [shape: f32[16,128], index: 0, kind: input, shape index: {}]
  %s1 = inlined_call_operand.hbm [shape: f32[128,384], index: 1, kind: input, shape index: {}]
  %s2 = inlined_call_operand.vmem [shape: f32[1,384], index: 2, kind: input, shape index: {}]
  %s3 = inlined_call_operand.hbm [shape: f32[16,384], index: 3, kind: output, shape index: {}]
  %s4 = sld [smem:[#allocation0]]
  $region38: #{tpu_custom_call.1} parent=0
    _
  %s6 = ssub.s32 1, %s4
  %s7 = scalar_select 0, %s6, %s4
  $region1: #{tpu_custom_call.1} parent=0
    #allocation3 [shape = 'u8[8192]{0}', space=vmem, size = 0x2000, scoped, tag = 'input window, operand 0, single buffered']
    #allocation4 [shape = 's32[1]{0}', space=sflag, size = 0x4, scoped, tag = 'scoped memory for tpu_custom_call.1']
    #allocation5 [shape = 's32[1]{0}', space=sflag, size = 0x4, scoped, tag = 'scoped memory for tpu_custom_call.1']
    #allocation6 [shape = 'u8[196608]{0}', space=vmem, size = 0x30000, scoped, tag = 'input window, operand 1, single buffered']
    #allocation7 [shape = 's32[1]{0}', space=sflag, size = 0x4, scoped, tag = 'scoped memory for tpu_custom_call.1']
    #allocation8 [shape = 'u8[24576]{0}', space=vmem, size = 0x6000, scoped, tag = 'output window, operand 0, single buffered']
    %8 = vsyncpa [#allocation4], 0
    %9 = vsyncpa [#allocation7], 0
    %10 = vsyncpa [#allocation5], 0
    // Predicated region
    $region2: #{tpu_custom_call.1} parent=1 // pred_check
      _
    $region3: #{tpu_custom_call.1} parent=1 // pred_check_branch
      %12 = sbr.rel (0) target = $region5
    $region4: #{tpu_custom_call.1} parent=1 // pred_region
      %s14 = ssub.s32 256, 256
      %15 = vsyncadd [#allocation4], %s14
      %s16 = sshll.u32 [#allocation3], 4
      %s17 = int_to_ptr.vmem [resolvable:$true] %s16
      %22 = dma.hbm_to_vmem [thread:$0]  %s0, 256, %s17, [#allocation4], 128, 128, 8
    $region5: #{tpu_custom_call.1} parent=1 // pred_fallthru
      _
    // Predicated region
    $region6: #{tpu_custom_call.1} parent=1 // pred_check
      _
    $region7: #{tpu_custom_call.1} parent=1 // pred_check_branch
      %24 = sbr.rel (0) target = $region9
    $region8: #{tpu_custom_call.1} parent=1 // pred_region
      %s26 = ssub.s32 6144, 6144
      %27 = vsyncadd [#allocation7], %s26
      %s28 = sshll.u32 [#allocation6], 4
      %s29 = int_to_ptr.vmem [resolvable:$true] %s28
      %34 = dma.hbm_to_vmem [thread:$0]  %s1, 6144, %s29, [#allocation7], 384, 384, 24
    $region9: #{tpu_custom_call.1} parent=1 // pred_fallthru
      _
    // Predicated region
    $region10: #{tpu_custom_call.1} parent=1 // pred_check
      _
    $region11: #{tpu_custom_call.1} parent=1 // pred_check_branch
      %36 = sbr.rel (0) target = $region13
    $region12: #{tpu_custom_call.1} parent=1 // pred_region
      _
    $region13: #{tpu_custom_call.1} parent=1 // pred_fallthru
      _
    // Predicated region
    $region14: #{tpu_custom_call.1} parent=1 // pred_check
      _
    $region15: #{tpu_custom_call.1} parent=1 // pred_check_branch
      %38 = sbr.rel (0) target = $region17
    $region16: #{tpu_custom_call.1} parent=1 // pred_region
      %39 = dma.done [#allocation4], 256
    $region17: #{tpu_custom_call.1} parent=1 // pred_fallthru
      _
    // Predicated region
    $region18: #{tpu_custom_call.1} parent=1 // pred_check
      _
    $region19: #{tpu_custom_call.1} parent=1 // pred_check_branch
      %41 = sbr.rel (0) target = $region21
    $region20: #{tpu_custom_call.1} parent=1 // pred_region
      %42 = dma.done [#allocation7], 6144
    $region21: #{tpu_custom_call.1} parent=1 // pred_fallthru
      _
    %p43 = scmp.eq.s32.totalorder 0, 0
    // Predicated region
    $region22: #{tpu_custom_call.1} parent=1 // pred_check
      %p44 = pneg %p43
    $region23: #{tpu_custom_call.1} parent=1 // pred_check_branch
      %46 = sbr.rel (%p44) target = $region25
    $region24: #{tpu_custom_call.1} parent=1 // pred_region
      %47 = vst [vmem:[#allocation2] sm:$0xff] 0.0
      %48 = vst [vmem:[#allocation2 + $0x8] sm:$0xff] 0.0
      %49 = vst [vmem:[#allocation2 + $0x10] sm:$0xff] 0.0
      %50 = vst [vmem:[#allocation2 + $0x18] sm:$0xff] 0.0
      %51 = vst [vmem:[#allocation2 + $0x20] sm:$0xff] 0.0
      %52 = vst [vmem:[#allocation2 + $0x28] sm:$0xff] 0.0
    $region25: #{tpu_custom_call.1} parent=1 // pred_fallthru
      _
    %v53 = vld [vmem:[#allocation3] sm:$0xff]
    %v54 = vld [vmem:[#allocation3 + $0x8] sm:$0xff]
    %v55 = vld [vmem:[#allocation2] sm:$0xff]
    %v56 = vld [vmem:[#allocation2 + $0x8] sm:$0xff]
    %v57 = vld [vmem:[#allocation2 + $0x10] sm:$0xff]
    %v58 = vld [vmem:[#allocation2 + $0x18] sm:$0xff]
    %v59 = vld [vmem:[#allocation2 + $0x20] sm:$0xff]
    %v60 = vld [vmem:[#allocation2 + $0x28] sm:$0xff]
    %v61 = vld [vmem:[#allocation6] sm:$0xff]
    %v62 = vld [vmem:[#allocation6 + $0x8] sm:$0xff]
    %v63 = vld [vmem:[#allocation6 + $0x10] sm:$0xff]
    %v64 = vld [vmem:[#allocation6 + $0x18] sm:$0xff]
    %v65 = vld [vmem:[#allocation6 + $0x20] sm:$0xff]
    %v66 = vld [vmem:[#allocation6 + $0x28] sm:$0xff]
    %v67 = vld [vmem:[#allocation6 + $0x30] sm:$0xff]
    %v68 = vld [vmem:[#allocation6 + $0x38] sm:$0xff]
    %v69 = vld [vmem:[#allocation6 + $0x40] sm:$0xff]
    %v70 = vld [vmem:[#allocation6 + $0x48] sm:$0xff]
    %v71 = vld [vmem:[#allocation6 + $0x50] sm:$0xff]
    %v72 = vld [vmem:[#allocation6 + $0x58] sm:$0xff]
    %v73 = vld [vmem:[#allocation6 + $0x60] sm:$0xff]
    %v74 = vld [vmem:[#allocation6 + $0x68] sm:$0xff]
    %v75 = vld [vmem:[#allocation6 + $0x70] sm:$0xff]
    %v76 = vld [vmem:[#allocation6 + $0x78] sm:$0xff]
    %v77 = vld [vmem:[#allocation6 + $0x80] sm:$0xff]
    %v78 = vld [vmem:[#allocation6 + $0x88] sm:$0xff]
    %v79 = vld [vmem:[#allocation6 + $0x90] sm:$0xff]
    %v80 = vld [vmem:[#allocation6 + $0x98] sm:$0xff]
    %v81 = vld [vmem:[#allocation6 + $0xa0] sm:$0xff]
    %v82 = vld [vmem:[#allocation6 + $0xa8] sm:$0xff]
    %v83 = vld [vmem:[#allocation6 + $0xb0] sm:$0xff]
    %v84 = vld [vmem:[#allocation6 + $0xb8] sm:$0xff]
    %v85 = vld [vmem:[#allocation6 + $0xc0] sm:$0xff]
    %v86 = vld [vmem:[#allocation6 + $0xc8] sm:$0xff]
    %v87 = vld [vmem:[#allocation6 + $0xd0] sm:$0xff]
    %v88 = vld [vmem:[#allocation6 + $0xd8] sm:$0xff]
    %v89 = vld [vmem:[#allocation6 + $0xe0] sm:$0xff]
    %v90 = vld [vmem:[#allocation6 + $0xe8] sm:$0xff]
    %v91 = vld [vmem:[#allocation6 + $0xf0] sm:$0xff]
    %v92 = vld [vmem:[#allocation6 + $0xf8] sm:$0xff]
    %v93 = vld [vmem:[#allocation6 + $0x100] sm:$0xff]
    %v94 = vld [vmem:[#allocation6 + $0x108] sm:$0xff]
    %v95 = vld [vmem:[#allocation6 + $0x110] sm:$0xff]
    %v96 = vld [vmem:[#allocation6 + $0x118] sm:$0xff]
    %v97 = vld [vmem:[#allocation6 + $0x120] sm:$0xff]
    %v98 = vld [vmem:[#allocation6 + $0x128] sm:$0xff]
    %v99 = vld [vmem:[#allocation6 + $0x130] sm:$0xff]
    %v100 = vld [vmem:[#allocation6 + $0x138] sm:$0xff]
    %v101 = vld [vmem:[#allocation6 + $0x140] sm:$0xff]
    %v102 = vld [vmem:[#allocation6 + $0x148] sm:$0xff]
    %v103 = vld [vmem:[#allocation6 + $0x150] sm:$0xff]
    %v104 = vld [vmem:[#allocation6 + $0x158] sm:$0xff]
    %v105 = vld [vmem:[#allocation6 + $0x160] sm:$0xff]
    %v106 = vld [vmem:[#allocation6 + $0x168] sm:$0xff]
    %v107 = vld [vmem:[#allocation6 + $0x170] sm:$0xff]
    %v108 = vld [vmem:[#allocation6 + $0x178] sm:$0xff]
    %109 = vmatprep.subr.mxu0 %v107
    %110 = vmatpush1.msra.mxu0 %v106
    %111 = vmatprep.subr.mxu0 %v104
    %112 = vmatpush1.msra.mxu0 %v103
    %113 = vmatprep.subr.mxu0 %v101
    %114 = vmatpush1.msra.mxu0 %v100
    %115 = vmatprep.subr.mxu0 %v98
    %116 = vmatpush1.msra.mxu0 %v97
    %117 = vmatprep.subr.mxu0 %v95
    %118 = vmatpush1.msra.mxu0 %v94
    %119 = vmatprep.subr.mxu0 %v92
    %120 = vmatpush1.msra.mxu0 %v91
    %121 = vmatprep.subr.mxu0 %v89
    %122 = vmatpush1.msra.mxu0 %v88
    %123 = vmatprep.subr.mxu0 %v86
    %124 = vmatpush1.msra.mxu0 %v85
    %125 = vmatprep.subr.mxu0 %v83
    %126 = vmatpush1.msra.mxu0 %v82
    %127 = vmatprep.subr.mxu0 %v80
    %128 = vmatpush1.msra.mxu0 %v79
    %129 = vmatprep.subr.mxu0 %v77
    %130 = vmatpush1.msra.mxu0 %v76
    %131 = vmatprep.subr.mxu0 %v74
    %132 = vmatpush1.msra.mxu0 %v73
    %133 = vmatprep.subr.mxu0 %v71
    %134 = vmatpush1.msra.mxu0 %v70
    %135 = vmatprep.subr.mxu0 %v68
    %136 = vmatpush1.msra.mxu0 %v67
    %137 = vmatprep.subr.mxu0 %v65
    %138 = vmatpush1.msra.mxu0 %v64
    %139 = vmatprep.subr.mxu0 %v62
    %140 = vmatpush1.msra.mxu0 %v61
    %141 = vmatprep.subr.mxu0 0.0
    %142 = vmatpush2.msra.mxu0 0.0
    %143 = vmatprep.subr.mxu0 0.0
    %144 = vmatpush2.msra.mxu0 0.0
    %145 = vmatprep.subr.mxu0 0.0
    %146 = vmatpush2.msra.mxu0 0.0
    %147 = vmatprep.subr.mxu0 0.0
    %148 = vmatpush2.msra.mxu0 0.0
    %149 = vmatprep.subr.mxu0 0.0
    %150 = vmatpush2.msra.mxu0 0.0
    %151 = vmatprep.subr.mxu0 0.0
    %152 = vmatpush2.msra.mxu0 0.0
    %153 = vmatprep.subr.mxu0 0.0
    %154 = vmatpush2.msra.mxu0 0.0
    %155 = vmatprep.subr.mxu0 0.0
    %156 = vmatpush2.msra.mxu0 0.0
    %157 = vmatprep.subr.mxu0 0.0
    %158 = vmatpush2.msra.mxu0 0.0
    %159 = vmatprep.subr.mxu0 0.0
    %160 = vmatpush2.msra.mxu0 0.0
    %161 = vmatprep.subr.mxu0 0.0
    %162 = vmatpush2.msra.mxu0 0.0
    %163 = vmatprep.subr.mxu0 0.0
    %164 = vmatpush2.msra.mxu0 0.0
    %165 = vmatprep.subr.mxu0 0.0
    %166 = vmatpush2.msra.mxu0 0.0
    %167 = vmatprep.subr.mxu0 0.0
    %168 = vmatpush2.msra.mxu0 0.0
    %169 = vmatprep.subr.mxu0 0.0
    %170 = vmatpush2.msra.mxu0 0.0
    %171 = vmatprep.subr.mxu0 0.0
    %172 = vmatpush2.msra.mxu0 0.0
    %173 = vmatprep.mubr.f32.mxu0 0.0
    %174 = vmatmul.mubr.f32.gmra.mxu0 %v53
    %v175 = vpop.f32.mrf.mxu0
    %v176 = vadd.f32 0.0, %v175
    %v177 = vpop.f32.mrf.mxu0
    %v178 = vadd.f32 0.0, %v177
    %179 = vmatprep.mubr.f32.mxu0 0.0
    %180 = vmatmul.mubr.f32.gmra.mxu0 %v54
    %v181 = vpop.f32.mrf.mxu0
    %v182 = vadd.f32 0.0, %v181
    %v183 = vpop.f32.mrf.mxu0
    %v184 = vadd.f32 0.0, %v183
    %185 = vdwg.mxu0
    %186 = vmatprep.subr.mxu0 0.0
    %187 = vmatpush1.msra.mxu0 %v108
    %188 = vmatprep.subr.mxu0 0.0
    %189 = vmatpush1.msra.mxu0 %v105
    %190 = vmatprep.subr.mxu0 0.0
    %191 = vmatpush1.msra.mxu0 %v102
    %192 = vmatprep.subr.mxu0 0.0
    %193 = vmatpush1.msra.mxu0 %v99
    %194 = vmatprep.subr.mxu0 0.0
    %195 = vmatpush1.msra.mxu0 %v96
    %196 = vmatprep.subr.mxu0 0.0
    %197 = vmatpush1.msra.mxu0 %v93
    %198 = vmatprep.subr.mxu0 0.0
    %199 = vmatpush1.msra.mxu0 %v90
    %200 = vmatprep.subr.mxu0 0.0
    %201 = vmatpush1.msra.mxu0 %v87
    %202 = vmatprep.subr.mxu0 0.0
    %203 = vmatpush1.msra.mxu0 %v84
    %204 = vmatprep.subr.mxu0 0.0
    %205 = vmatpush1.msra.mxu0 %v81
    %206 = vmatprep.subr.mxu0 0.0
    %207 = vmatpush1.msra.mxu0 %v78
    %208 = vmatprep.subr.mxu0 0.0
    %209 = vmatpush1.msra.mxu0 %v75
    %210 = vmatprep.subr.mxu0 0.0
    %211 = vmatpush1.msra.mxu0 %v72
    %212 = vmatprep.subr.mxu0 0.0
    %213 = vmatpush1.msra.mxu0 %v69
    %214 = vmatprep.subr.mxu0 0.0
    %215 = vmatpush1.msra.mxu0 %v66
    %216 = vmatprep.subr.mxu0 0.0
    %217 = vmatpush1.msra.mxu0 %v63
    %218 = vmatprep.subr.mxu0 0.0
    %219 = vmatpush2.msra.mxu0 0.0
    %220 = vmatprep.subr.mxu0 0.0
    %221 = vmatpush2.msra.mxu0 0.0
    %222 = vmatprep.subr.mxu0 0.0
    %223 = vmatpush2.msra.mxu0 0.0
    %224 = vmatprep.subr.mxu0 0.0
    %225 = vmatpush2.msra.mxu0 0.0
    %226 = vmatprep.subr.mxu0 0.0
    %227 = vmatpush2.msra.mxu0 0.0
    %228 = vmatprep.subr.mxu0 0.0
    %229 = vmatpush2.msra.mxu0 0.0
    %230 = vmatprep.subr.mxu0 0.0
    %231 = vmatpush2.msra.mxu0 0.0
    %232 = vmatprep.subr.mxu0 0.0
    %233 = vmatpush2.msra.mxu0 0.0
    %234 = vmatprep.subr.mxu0 0.0
    %235 = vmatpush2.msra.mxu0 0.0
    %236 = vmatprep.subr.mxu0 0.0
    %237 = vmatpush2.msra.mxu0 0.0
    %238 = vmatprep.subr.mxu0 0.0
    %239 = vmatpush2.msra.mxu0 0.0
    %240 = vmatprep.subr.mxu0 0.0
    %241 = vmatpush2.msra.mxu0 0.0
    %242 = vmatprep.subr.mxu0 0.0
    %243 = vmatpush2.msra.mxu0 0.0
    %244 = vmatprep.subr.mxu0 0.0
    %245 = vmatpush2.msra.mxu0 0.0
    %246 = vmatprep.subr.mxu0 0.0
    %247 = vmatpush2.msra.mxu0 0.0
    %248 = vmatprep.subr.mxu0 0.0
    %249 = vmatpush2.msra.mxu0 0.0
    %250 = vmatprep.mubr.f32.mxu0 0.0
    %251 = vmatmul.mubr.f32.gmra.mxu0 %v53
    %v252 = vpop.f32.mrf.mxu0
    %v253 = vadd.f32 0.0, %v252
    %v254 = vpop.f32.mrf.mxu0
    %255 = vmatprep.mubr.f32.mxu0 0.0
    %256 = vmatmul.mubr.f32.gmra.mxu0 %v54
    %v257 = vpop.f32.mrf.mxu0
    %v258 = vadd.f32 0.0, %v257
    %v259 = vpop.f32.mrf.mxu0
    %260 = vdwg.mxu0
    %v261 = vadd.f32 %v55, %v176
    %v262 = vadd.f32 %v56, %v178
    %v263 = vadd.f32 %v57, %v253
    %v264 = vadd.f32 %v58, %v182
    %v265 = vadd.f32 %v59, %v184
    %v266 = vadd.f32 %v60, %v258
    %267 = vst [vmem:[#allocation2] sm:$0xff] %v261
    %268 = vst [vmem:[#allocation2 + $0x8] sm:$0xff] %v262
    %269 = vst [vmem:[#allocation2 + $0x10] sm:$0xff] %v263
    %270 = vst [vmem:[#allocation2 + $0x18] sm:$0xff] %v264
    %271 = vst [vmem:[#allocation2 + $0x20] sm:$0xff] %v265
    %272 = vst [vmem:[#allocation2 + $0x28] sm:$0xff] %v266
    // Predicated region
    $region26: #{tpu_custom_call.1} parent=1 // pred_check
      %p273 = pneg %p43
    $region27: #{tpu_custom_call.1} parent=1 // pred_check_branch
      %275 = sbr.rel (%p273) target = $region29
    $region28: #{tpu_custom_call.1} parent=1 // pred_region
      %v276 = vld [vmem:[#allocation2] sm:$0xff]
      %v277 = vld [vmem:[#allocation2 + $0x8] sm:$0xff]
      %v278 = vld [vmem:[#allocation2 + $0x10] sm:$0xff]
      %v279 = vld [vmem:[#allocation2 + $0x18] sm:$0xff]
      %v280 = vld [vmem:[#allocation2 + $0x20] sm:$0xff]
      %v281 = vld [vmem:[#allocation2 + $0x28] sm:$0xff]
      %v282 = vld [vmem:[%s2] sm:$0x7]
      %v284 = vlaneseq
      %v285 = vshrl.u32 %v284, 7
      %v286 = vsub.s32 0, %v285
      %v287 = vrot.slane %v282, %v286
      %v288 = vlaneseq
      %v289 = vshrl.u32 %v288, 7
      %v290 = vsub.s32 1, %v289
      %v291 = vrot.slane %v282, %v290
      %v292 = vlaneseq
      %v293 = vshrl.u32 %v292, 7
      %v294 = vsub.s32 2, %v293
      %v295 = vrot.slane %v282, %v294
      %v299 = vadd.f32 %v276, %v287
      %v300 = vadd.f32 %v277, %v291
      %v301 = vadd.f32 %v278, %v295
      %v302 = vadd.f32 %v279, %v287
      %v303 = vadd.f32 %v280, %v291
      %v304 = vadd.f32 %v281, %v295
      %305 = vst [vmem:[#allocation8] sm:$0xff] %v299
      %306 = vst [vmem:[#allocation8 + $0x8] sm:$0xff] %v300
      %307 = vst [vmem:[#allocation8 + $0x10] sm:$0xff] %v301
      %308 = vst [vmem:[#allocation8 + $0x18] sm:$0xff] %v302
      %309 = vst [vmem:[#allocation8 + $0x20] sm:$0xff] %v303
      %310 = vst [vmem:[#allocation8 + $0x28] sm:$0xff] %v304
    $region29: #{tpu_custom_call.1} parent=1 // pred_fallthru
      _
    // Predicated region
    $region30: #{tpu_custom_call.1} parent=1 // pred_check
      _
    $region31: #{tpu_custom_call.1} parent=1 // pred_check_branch
      %312 = sbr.rel (0) target = $region33
    $region32: #{tpu_custom_call.1} parent=1 // pred_region
      %s314 = ssub.s32 768, 768
      %315 = vsyncadd [#allocation5], %s314
      %s316 = sshll.u32 [#allocation8], 4
      %s317 = int_to_ptr.vmem [resolvable:$true] %s316
      %322 = dma.vmem_to_hbm [thread:$0]  %s317, 768, %s3, [#allocation5], 384, 384, 24
    $region33: #{tpu_custom_call.1} parent=1 // pred_fallthru
      _
    // Predicated region
    $region34: #{tpu_custom_call.1} parent=1 // pred_check
      _
    $region35: #{tpu_custom_call.1} parent=1 // pred_check_branch
      %324 = sbr.rel (0) target = $region37
    $region36: #{tpu_custom_call.1} parent=1 // pred_region
      %325 = dma.done [#allocation5], 768
    $region37: #{tpu_custom_call.1} parent=1 // pred_fallthru
      _
    %326 = vsyncpa [#allocation4], 1
    %327 = vsyncpa [#allocation7], 1
    %328 = vsyncpa [#allocation5], 1

</llo_original>
